<compile_context>
chip_gen: v7x
topology: tpu7x:2x2x1
jax: 0.10.0
libtpu: 0.0.40
codegen_flags: <defaults>
</compile_context>

<pallas_src>
import functools

import jax
import jax.numpy as jnp
from jax.experimental import pallas as pl
from jax.experimental.pallas import tpu as pltpu

# Constants mirrored from the PyTorch module.
NUM_ATT_CLASSES = 4
NUM_IA_CLASSES = 9
NUM_REL_CLASSES = 19
NUM_TA_CLASSES = 33


def _head_kernel(*refs, training: bool, multi_k: bool):
    if training:
        x_ref, m_ref, w_ref, b_ref, o_ref = refs[:5]
    else:
        x_ref, w_ref, b_ref, o_ref = refs[:4]
        m_ref = None
    acc_ref = refs[-1] if multi_k else None

    xv = x_ref[...]
    if training:
        # Mask already holds {0, 1/(1-p)} in x's dtype (inverted dropout).
        # Note: for the module's heads dim_out fits in one N tile, so this
        # multiply is not repeated across N tiles.
        xv = xv * m_ref[...]

    # x: (tm, tk) contracted with W: (tn, tk) on the shared tk axis -> (tm, tn).
    # Native-dtype operands on the MXU, f32 accumulation.
    part = jax.lax.dot_general(
        xv, w_ref[...],
        dimension_numbers=(((1,), (1,)), ((), ())),
        preferred_element_type=jnp.float32)

    if multi_k:
        k = pl.program_id(2)

        @pl.when(k == 0)
        def _():
            # Fold the bias into the accumulator init (cheaper epilogue).
            acc_ref[...] = jnp.broadcast_to(
                b_ref[...].astype(jnp.float32), acc_ref.shape)

        acc_ref[...] += part

        @pl.when(k == pl.num_programs(2) - 1)
        def _():
            o_ref[...] = acc_ref[...].astype(o_ref.dtype)
    else:
        # Single-K fast path: no accumulator, no branches.
        o_ref[...] = (part + b_ref[...].astype(jnp.float32)).astype(o_ref.dtype)


def _round_up(a, m):
    return pl.cdiv(a, m) * m


def _pick_tiles(B, dim_in, dim_out):
    tm = B if B <= 256 else 256
    tn = dim_out if dim_out <= 512 else 256
    tk = dim_in if dim_in <= 1024 else 512
    return tm, tn, tk


def _pad2(a, rows, cols):
    pr, pc = rows - a.shape[0], cols - a.shape[1]
    if pr == 0 and pc == 0:
        return a
    return jnp.pad(a, ((0, pr), (0, pc)))


def predicate_cls_head(x, weight, bias, *, dropout_rng=None, p=0.5):
    """Forward of PredicateCLSHead: Linear(Dropout(p)(x)).

    x:      (B, dim_in)
    weight: (dim_out, dim_in)   PyTorch nn.Linear layout (NOT transposed here)
    bias:   (dim_out,)
    dropout_rng: None -> eval mode (dropout == identity, torch .eval());
                 a PRNG key -> train mode (inverted dropout, keep prob 1-p).
    """
    B, dim_in = x.shape
    dim_out, dim_in_w = weight.shape
    assert dim_in_w == dim_in and bias.shape == (dim_out,)

    training = dropout_rng is not None
    if training:
        # TODO(synk): torch's dropout RNG stream cannot be bit-reproduced; the
        # mask is drawn with jax.random (same distribution / scaling).
        keep = jax.random.bernoulli(dropout_rng, 1.0 - p, x.shape)
        mask = keep.astype(x.dtype) * jnp.asarray(1.0 / (1.0 - p), dtype=x.dtype)
    else:
        mask = None

    tm, tn, tk = _pick_tiles(B, dim_in, dim_out)
    Bp, Kp, Np = _round_up(B, tm), _round_up(dim_in, tk), _round_up(dim_out, tn)

    xp = _pad2(x, Bp, Kp)
    wp = _pad2(weight, Np, Kp)
    bp = _pad2(bias.reshape(1, dim_out), 1, Np)
    if training:
        mask = _pad2(mask, Bp, Kp)

    grid = (Bp // tm, Np // tn, Kp // tk)
    multi_k = grid[2] > 1

    kernel = functools.partial(_head_kernel, training=training, multi_k=multi_k)

    in_specs = [pl.BlockSpec((tm, tk), lambda i, j, k: (i, k))]          # x
    inputs = [xp]
    if training:
        in_specs.append(pl.BlockSpec((tm, tk), lambda i, j, k: (i, k)))  # dropout mask
        inputs.append(mask)
    in_specs += [
        pl.BlockSpec((tn, tk), lambda i, j, k: (j, k)),                  # W, (out, in) layout
        pl.BlockSpec((1, tn), lambda i, j, k: (0, j)),                   # bias
    ]
    inputs += [wp, bp]

    out = pl.pallas_call(
        kernel,
        out_shape=jax.ShapeDtypeStruct((Bp, Np), x.dtype),
        grid_spec=pltpu.PrefetchScalarGridSpec(
            num_scalar_prefetch=0,
            grid=grid,
            in_specs=in_specs,
            out_specs=pl.BlockSpec((tm, tn), lambda i, j, k: (i, j)),
            scratch_shapes=([pltpu.VMEM((tm, tn), jnp.float32)] if multi_k else []),
        ),
        compiler_params=pltpu.CompilerParams(
            dimension_semantics=("parallel", "parallel", "arbitrary")),
    )(*inputs)

    if Bp != B or Np != dim_out:
        out = out[:B, :dim_out]
    return out


if __name__ == "__main__":
    key = jax.random.PRNGKey(0)
    k_embed, k_idx, k_drop, *k_params = jax.random.split(key, 12)

    # PredicateCLSModel(dim=512), cfg.oracle == False -> dim_hidden = 512.
    dim_hidden = 512
    n_nodes, n_edges = 16, 8

    # TODO(synk): GCNEncoder / MLP / BCE-with-logits loss of PredicateCLSModel are
    # not defined in the provided source; `embed` stands in for the encoder output
    # and only the PredicateCLSHead forward is implemented as a Pallas kernel.
    embed = jax.random.normal(k_embed, (n_nodes, dim_hidden), dtype=jnp.float32)

    def make_head(k, dim_in, dim_out):
        kw, kb = jax.random.split(k)
        w = jax.random.normal(kw, (dim_out, dim_in), jnp.float32) * 0.02
        b = jax.random.normal(kb, (dim_out,), jnp.float32) * 0.01
        return w, b

    att_w, att_b = make_head(k_params[0], dim_hidden, NUM_ATT_CLASSES)
    ia_w, ia_b = make_head(k_params[1], dim_hidden, NUM_IA_CLASSES)
    rel_w, rel_b = make_head(k_params[2], 2 * dim_hidden, NUM_REL_CLASSES)
    ta_w, ta_b = make_head(k_params[3], 2 * dim_hidden, NUM_TA_CLASSES)

    def ref_head(x, w, b, mask=None):
        xv = x if mask is None else x * mask
        y = jnp.dot(xv.astype(jnp.float32), w.astype(jnp.float32).T,
                    precision=jax.lax.Precision.HIGHEST) + b.astype(jnp.float32)
        return y.astype(x.dtype)

    TOL = dict(atol=2e-3, rtol=2e-3)

    # ---- eval-mode node heads (torch .eval(): dropout == identity) ----
    att_pred = jax.block_until_ready(predicate_cls_head(embed, att_w, att_b))
    ia_pred = jax.block_until_ready(predicate_cls_head(embed, ia_w, ia_b))
    assert jnp.allclose(att_pred, ref_head(embed, att_w, att_b), **TOL)
    assert jnp.allclose(ia_pred, ref_head(embed, ia_w, ia_b), **TOL)

    # ---- edge heads: nodes = cat(embed[src], embed[trg]), vectorized over edges ----
    src = jax.random.randint(k_idx, (n_edges,), 0, n_nodes)
    trg = jax.random.randint(jax.random.fold_in(k_idx, 1), (n_edges,), 0, n_nodes)
    edge_feat = jnp.concatenate([embed[src], embed[trg]], axis=-1)  # (n_edges, 1024)
    rel_pred = jax.block_until_ready(predicate_cls_head(edge_feat, rel_w, rel_b))
    ta_pred = jax.block_until_ready(predicate_cls_head(edge_feat, ta_w, ta_b))
    assert jnp.allclose(rel_pred, ref_head(edge_feat, rel_w, rel_b), **TOL)
    assert jnp.allclose(ta_pred, ref_head(edge_feat, ta_w, ta_b), **TOL)

    # ---- training-mode dropout (p=0.5, inverted scaling), deterministic mask ----
    att_pred_tr = jax.block_until_ready(
        predicate_cls_head(embed, att_w, att_b, dropout_rng=k_drop))
    mask = jax.random.bernoulli(k_drop, 0.5, embed.shape).astype(embed.dtype) * 2.0
    assert jnp.allclose(att_pred_tr, ref_head(embed, att_w, att_b, mask), **TOL)

    # ---- K-tiled accumulator path + native-bf16 MXU path self-checks ----
    xb = jax.random.normal(k_params[4], (12, 1536), jnp.float32)
    wb, bb = make_head(k_params[5], 1536, NUM_TA_CLASSES)
    y32 = jax.block_until_ready(predicate_cls_head(xb, wb, bb))
    assert jnp.allclose(y32, ref_head(xb, wb, bb), **TOL)
    y16 = jax.block_until_ready(
        predicate_cls_head(xb.astype(jnp.bfloat16), wb.astype(jnp.bfloat16),
                           bb.astype(jnp.bfloat16)))
    ref16 = ref_head(xb.astype(jnp.bfloat16), wb.astype(jnp.bfloat16),
                     bb.astype(jnp.bfloat16))
    assert jnp.allclose(y16.astype(jnp.float32), ref16.astype(jnp.float32),
                        atol=5e-2, rtol=5e-2)

    print("KERNEL_OK")
</pallas_src>

<mosaic_0001>
module attributes {stable_mosaic.version = 11 : i64} {
  func.func @_head_kernel(%arg0: i32, %arg1: i32, %arg2: i32, %arg3: memref<16x512xf32, #tpu.memory_space<vmem>>, %arg4: memref<4x512xf32, #tpu.memory_space<vmem>>, %arg5: memref<1x4xf32, #tpu.memory_space<vmem>>, %arg6: memref<16x4xf32, #tpu.memory_space<vmem>>) attributes {dimension_semantics = [#tpu.dimension_semantics<parallel>, #tpu.dimension_semantics<parallel>, #tpu.dimension_semantics<arbitrary>], iteration_bounds = array<i64: 1, 1, 1>, scalar_prefetch = 0 : i64, scratch_operands = 0 : i64, tpu.core_type = #tpu.core_type<tc>, window_params = [{transform_indices = @transform_0, window_bounds = array<i64: 16, 512>}, {transform_indices = @transform_1, window_bounds = array<i64: 4, 512>}, {transform_indices = @transform_2, window_bounds = array<i64: 1, 4>}, {transform_indices = @transform_3, window_bounds = array<i64: 16, 4>}]} {
    %c0 = arith.constant 0 : index
    %c0_0 = arith.constant 0 : index
    %0 = vector.load %arg3[%c0, %c0_0] : memref<16x512xf32, #tpu.memory_space<vmem>>, vector<16x512xf32>
    %c0_1 = arith.constant 0 : index
    %c0_2 = arith.constant 0 : index
    %1 = vector.load %arg4[%c0_1, %c0_2] : memref<4x512xf32, #tpu.memory_space<vmem>>, vector<4x512xf32>
    %cst = arith.constant dense<0.000000e+00> : vector<16x4xf32>
    %2 = tpu.matmul %0, %1, %cst {dimension_numbers = #tpu.dot_dimension_numbers<[1], [1], [0], [0], [0, 0, 1, 0], [], []>} : vector<16x512xf32>, vector<4x512xf32>, vector<16x4xf32> -> vector<16x4xf32>
    %c0_3 = arith.constant 0 : index
    %c0_4 = arith.constant 0 : index
    %3 = vector.load %arg5[%c0_3, %c0_4] : memref<1x4xf32, #tpu.memory_space<vmem>>, vector<1x4xf32>
    %4 = vector.broadcast %3 : vector<1x4xf32> to vector<16x4xf32>
    %5 = arith.addf %2, %4 : vector<16x4xf32>
    %c0_5 = arith.constant 0 : index
    %c0_6 = arith.constant 0 : index
    %6 = vector.load %arg6[%c0_5, %c0_6] : memref<16x4xf32, #tpu.memory_space<vmem>>, vector<16x4xf32>
    tpu.vector_store %arg6[%c0_5, %c0_6], %5 {strides = array<i32>} : memref<16x4xf32, #tpu.memory_space<vmem>>, vector<16x4xf32>,
    return
  }
  func.func @transform_0(%arg0: i32, %arg1: i32, %arg2: i32) -> (i32, i32) {
    %c0_i32 = arith.constant 0 : i32
    return %arg0, %arg2 : i32, i32
  }
  func.func @transform_1(%arg0: i32, %arg1: i32, %arg2: i32) -> (i32, i32) {
    %c0_i32 = arith.constant 0 : i32
    return %arg1, %arg2 : i32, i32
  }
  func.func @transform_2(%arg0: i32, %arg1: i32, %arg2: i32) -> (i32, i32) {
    %c0_i32 = arith.constant 0 : i32
    %c0_i32_0 = arith.constant 0 : i32
    return %c0_i32, %arg1 : i32, i32
  }
  func.func @transform_3(%arg0: i32, %arg1: i32, %arg2: i32) -> (i32, i32) {
    %c0_i32 = arith.constant 0 : i32
    return %arg0, %arg1 : i32, i32
  }
}

</mosaic_0001>

<llo_original>
// kernel: tpu_custom_call.1
$region0: #{tpu_custom_call.1}
  #allocation0 [shape = 'u32[]', space=smem, size = 0x4, offset = 0x4, fixed_abs, tag = 'smem constant byte address 0x4 - core index']
  #allocation1 [shape = 'u32[144,128]{1,0:T(1,128)}', space=vmem, size = 0x12000, scoped, tag = 'internal scratch']
  %s0 = inlined_call_operand.hbm [shape: f32[16,512], index: 0, kind: input, shape index: {}]
  %s1 = inlined_call_operand.hbm [shape: f32[4,512], index: 1, kind: input, shape index: {}]
  %s2 = inlined_call_operand.vmem [shape: f32[1,4], index: 2, kind: input, shape index: {}]
  %s3 = inlined_call_operand.vmem [shape: f32[16,4], index: 3, kind: output, shape index: {}]
  %s4 = sld [smem:[#allocation0]]
  $region30: #{tpu_custom_call.1} parent=0
    _
  %s6 = ssub.s32 1, %s4
  %s7 = scalar_select 0, %s6, %s4
  $region1: #{tpu_custom_call.1} parent=0
    #allocation2 [shape = 'u8[32768]{0}', space=vmem, size = 0x8000, scoped, tag = 'input window, operand 0, single buffered']
    #allocation3 [shape = 's32[1]{0}', space=sflag, size = 0x4, scoped, tag = 'scoped memory for tpu_custom_call.1']
    #allocation4 [shape = 'u8[8192]{0}', space=vmem, size = 0x2000, scoped, tag = 'input window, operand 1, single buffered']
    #allocation5 [shape = 's32[1]{0}', space=sflag, size = 0x4, scoped, tag = 'scoped memory for tpu_custom_call.1']
    %8 = vsyncpa [#allocation3], 0
    %9 = vsyncpa [#allocation5], 0
    // Predicated region
    $region2: #{tpu_custom_call.1} parent=1 // pred_check
      _
    $region3: #{tpu_custom_call.1} parent=1 // pred_check_branch
      %11 = sbr.rel (0) target = $region5
    $region4: #{tpu_custom_call.1} parent=1 // pred_region
      %s13 = ssub.s32 1024, 1024
      %14 = vsyncadd [#allocation3], %s13
      %s15 = sshll.u32 [#allocation2], 4
      %s16 = int_to_ptr.vmem [resolvable:$true] %s15
      %21 = dma.hbm_to_vmem [thread:$0]  %s0, 1024, %s16, [#allocation3], 512, 512, 32
    $region5: #{tpu_custom_call.1} parent=1 // pred_fallthru
      _
    // Predicated region
    $region6: #{tpu_custom_call.1} parent=1 // pred_check
      _
    $region7: #{tpu_custom_call.1} parent=1 // pred_check_branch
      %23 = sbr.rel (0) target = $region9
    $region8: #{tpu_custom_call.1} parent=1 // pred_region
      %s25 = ssub.s32 256, 256
      %26 = vsyncadd [#allocation5], %s25
      %s28 = sshll.u32 [#allocation4], 4
      %s29 = int_to_ptr.vmem [resolvable:$true] %s28
      %31 = dma.hbm_to_vmem [thread:$0]  %s1, 256, %s29, [#allocation5]
    $region9: #{tpu_custom_call.1} parent=1 // pred_fallthru
      _
    // Predicated region
    $region10: #{tpu_custom_call.1} parent=1 // pred_check
      _
    $region11: #{tpu_custom_call.1} parent=1 // pred_check_branch
      %33 = sbr.rel (0) target = $region13
    $region12: #{tpu_custom_call.1} parent=1 // pred_region
      _
    $region13: #{tpu_custom_call.1} parent=1 // pred_fallthru
      _
    // Predicated region
    $region14: #{tpu_custom_call.1} parent=1 // pred_check
      _
    $region15: #{tpu_custom_call.1} parent=1 // pred_check_branch
      %35 = sbr.rel (0) target = $region17
    $region16: #{tpu_custom_call.1} parent=1 // pred_region
      %36 = dma.done [#allocation3], 1024
    $region17: #{tpu_custom_call.1} parent=1 // pred_fallthru
      _
    // Predicated region
    $region18: #{tpu_custom_call.1} parent=1 // pred_check
      _
    $region19: #{tpu_custom_call.1} parent=1 // pred_check_branch
      %38 = sbr.rel (0) target = $region21
    $region20: #{tpu_custom_call.1} parent=1 // pred_region
      %39 = dma.done [#allocation5], 256
    $region21: #{tpu_custom_call.1} parent=1 // pred_fallthru
      _
    %v40 = vld [vmem:[#allocation2] sm:$0xff]
    %v41 = vld [vmem:[#allocation2 + $0x8] sm:$0xff]
    %v42 = vld [vmem:[#allocation2 + $0x10] sm:$0xff]
    %v43 = vld [vmem:[#allocation2 + $0x18] sm:$0xff]
    %v44 = vld [vmem:[#allocation2 + $0x20] sm:$0xff]
    %v45 = vld [vmem:[#allocation2 + $0x28] sm:$0xff]
    %v46 = vld [vmem:[#allocation2 + $0x30] sm:$0xff]
    %v47 = vld [vmem:[#allocation2 + $0x38] sm:$0xff]
    %v48 = vld [vmem:[#allocation4] sm:$0xff]
    %v49 = vld [vmem:[#allocation4 + $0x8] sm:$0xff]
    %v50 = vld [vmem:[%s2] sm:$0x1]
    %v52 = vlaneseq
    %v53 = vshrl.u32 %v52, 7
    %v54 = vsub.s32 0, %v53
    %v55 = vrot.slane %v50, %v54
    %v59 = vcombine.high %v48, %v48
    %v60 = vcombine.high %v49, %v49
    %63 = vmatprep.subr.mxu0 %v59
    %64 = vmatpush1.xpose.msra.mxu0 %v48
    %65 = vmatprep.subr.mxu0 0.0
    %66 = vmatpush1.xpose.msra.mxu0 0.0
    %67 = vmatprep.subr.mxu0 0.0
    %68 = vmatpush1.xpose.msra.mxu0 0.0
    %69 = vmatprep.subr.mxu0 0.0
    %70 = vmatpush1.xpose.msra.mxu0 0.0
    %71 = vmatprep.subr.mxu0 0.0
    %72 = vmatpush1.xpose.msra.mxu0 0.0
    %73 = vmatprep.subr.mxu0 0.0
    %74 = vmatpush1.xpose.msra.mxu0 0.0
    %75 = vmatprep.subr.mxu0 0.0
    %76 = vmatpush1.xpose.msra.mxu0 0.0
    %77 = vmatprep.subr.mxu0 0.0
    %78 = vmatpush1.xpose.msra.mxu0 0.0
    %79 = vmatprep.subr.mxu0 0.0
    %80 = vmatpush1.xpose.msra.mxu0 0.0
    %81 = vmatprep.subr.mxu0 0.0
    %82 = vmatpush1.xpose.msra.mxu0 0.0
    %83 = vmatprep.subr.mxu0 0.0
    %84 = vmatpush1.xpose.msra.mxu0 0.0
    %85 = vmatprep.subr.mxu0 0.0
    %86 = vmatpush1.xpose.msra.mxu0 0.0
    %87 = vmatprep.subr.mxu0 0.0
    %88 = vmatpush1.xpose.msra.mxu0 0.0
    %89 = vmatprep.subr.mxu0 0.0
    %90 = vmatpush1.xpose.msra.mxu0 0.0
    %91 = vmatprep.subr.mxu0 0.0
    %92 = vmatpush1.xpose.msra.mxu0 0.0
    %93 = vmatprep.subr.mxu0 0.0
    %94 = vmatpush1.xpose.msra.mxu0 0.0
    %95 = vmatprep.subr.mxu0 0.0
    %96 = vmatpush1.xpose.msra.mxu0 0.0
    %97 = vmatprep.subr.mxu0 0.0
    %98 = vmatpush1.xpose.msra.mxu0 0.0
    %99 = vmatprep.subr.mxu0 0.0
    %100 = vmatpush1.xpose.msra.mxu0 0.0
    %101 = vmatprep.subr.mxu0 0.0
    %102 = vmatpush1.xpose.msra.mxu0 0.0
    %103 = vmatprep.subr.mxu0 0.0
    %104 = vmatpush1.xpose.msra.mxu0 0.0
    %105 = vmatprep.subr.mxu0 0.0
    %106 = vmatpush1.xpose.msra.mxu0 0.0
    %107 = vmatprep.subr.mxu0 0.0
    %108 = vmatpush1.xpose.msra.mxu0 0.0
    %109 = vmatprep.subr.mxu0 0.0
    %110 = vmatpush1.xpose.msra.mxu0 0.0
    %111 = vmatprep.subr.mxu0 0.0
    %112 = vmatpush1.xpose.msra.mxu0 0.0
    %113 = vmatprep.subr.mxu0 0.0
    %114 = vmatpush1.xpose.msra.mxu0 0.0
    %115 = vmatprep.subr.mxu0 0.0
    %116 = vmatpush1.xpose.msra.mxu0 0.0
    %117 = vmatprep.subr.mxu0 0.0
    %118 = vmatpush1.xpose.msra.mxu0 0.0
    %119 = vmatprep.subr.mxu0 0.0
    %120 = vmatpush1.xpose.msra.mxu0 0.0
    %121 = vmatprep.subr.mxu0 0.0
    %122 = vmatpush1.xpose.msra.mxu0 0.0
    %123 = vmatprep.subr.mxu0 0.0
    %124 = vmatpush1.xpose.msra.mxu0 0.0
    %125 = vmatprep.subr.mxu0 0.0
    %126 = vmatpush1.xpose.msra.mxu0 0.0
    %127 = vmatprep.mubr.f32.mxu0 %v41
    %128 = vmatmul.mubr.f32.gmra.mrb[0].mxu0 %v40
    %v129 = vpop.f32.mrb[0].mxu0
    %v130 = vadd.f32 %v55, %v129
    %v131 = vpop.f32.mrb[0].mxu0
    %132 = vmatprep.mubr.f32.mxu0 %v45
    %133 = vmatmul.mubr.f32.gmra.mrb[0].mxu0 %v44
    %v134 = vpop.f32.mrb[0].mxu0
    %v135 = vadd.f32 %v55, %v134
    %v136 = vpop.f32.mrb[0].mxu0
    %137 = vdwg.mxu0
    %138 = vmatprep.subr.mxu0 %v60
    %139 = vmatpush1.xpose.msra.mxu0 %v49
    %140 = vmatprep.subr.mxu0 0.0
    %141 = vmatpush1.xpose.msra.mxu0 0.0
    %142 = vmatprep.subr.mxu0 0.0
    %143 = vmatpush1.xpose.msra.mxu0 0.0
    %144 = vmatprep.subr.mxu0 0.0
    %145 = vmatpush1.xpose.msra.mxu0 0.0
    %146 = vmatprep.subr.mxu0 0.0
    %147 = vmatpush1.xpose.msra.mxu0 0.0
    %148 = vmatprep.subr.mxu0 0.0
    %149 = vmatpush1.xpose.msra.mxu0 0.0
    %150 = vmatprep.subr.mxu0 0.0
    %151 = vmatpush1.xpose.msra.mxu0 0.0
    %152 = vmatprep.subr.mxu0 0.0
    %153 = vmatpush1.xpose.msra.mxu0 0.0
    %154 = vmatprep.subr.mxu0 0.0
    %155 = vmatpush1.xpose.msra.mxu0 0.0
    %156 = vmatprep.subr.mxu0 0.0
    %157 = vmatpush1.xpose.msra.mxu0 0.0
    %158 = vmatprep.subr.mxu0 0.0
    %159 = vmatpush1.xpose.msra.mxu0 0.0
    %160 = vmatprep.subr.mxu0 0.0
    %161 = vmatpush1.xpose.msra.mxu0 0.0
    %162 = vmatprep.subr.mxu0 0.0
    %163 = vmatpush1.xpose.msra.mxu0 0.0
    %164 = vmatprep.subr.mxu0 0.0
    %165 = vmatpush1.xpose.msra.mxu0 0.0
    %166 = vmatprep.subr.mxu0 0.0
    %167 = vmatpush1.xpose.msra.mxu0 0.0
    %168 = vmatprep.subr.mxu0 0.0
    %169 = vmatpush1.xpose.msra.mxu0 0.0
    %170 = vmatprep.subr.mxu0 0.0
    %171 = vmatpush1.xpose.msra.mxu0 0.0
    %172 = vmatprep.subr.mxu0 0.0
    %173 = vmatpush1.xpose.msra.mxu0 0.0
    %174 = vmatprep.subr.mxu0 0.0
    %175 = vmatpush1.xpose.msra.mxu0 0.0
    %176 = vmatprep.subr.mxu0 0.0
    %177 = vmatpush1.xpose.msra.mxu0 0.0
    %178 = vmatprep.subr.mxu0 0.0
    %179 = vmatpush1.xpose.msra.mxu0 0.0
    %180 = vmatprep.subr.mxu0 0.0
    %181 = vmatpush1.xpose.msra.mxu0 0.0
    %182 = vmatprep.subr.mxu0 0.0
    %183 = vmatpush1.xpose.msra.mxu0 0.0
    %184 = vmatprep.subr.mxu0 0.0
    %185 = vmatpush1.xpose.msra.mxu0 0.0
    %186 = vmatprep.subr.mxu0 0.0
    %187 = vmatpush1.xpose.msra.mxu0 0.0
    %188 = vmatprep.subr.mxu0 0.0
    %189 = vmatpush1.xpose.msra.mxu0 0.0
    %190 = vmatprep.subr.mxu0 0.0
    %191 = vmatpush1.xpose.msra.mxu0 0.0
    %192 = vmatprep.subr.mxu0 0.0
    %193 = vmatpush1.xpose.msra.mxu0 0.0
    %194 = vmatprep.subr.mxu0 0.0
    %195 = vmatpush1.xpose.msra.mxu0 0.0
    %196 = vmatprep.subr.mxu0 0.0
    %197 = vmatpush1.xpose.msra.mxu0 0.0
    %198 = vmatprep.subr.mxu0 0.0
    %199 = vmatpush1.xpose.msra.mxu0 0.0
    %200 = vmatprep.subr.mxu0 0.0
    %201 = vmatpush1.xpose.msra.mxu0 0.0
    %202 = vmatprep.mubr.f32.mxu0 %v43
    %203 = vmatmul.mubr.f32.gmra.mrb[0].mxu0 %v42
    %v204 = vpop.f32.mrb[0].mxu0
    %v205 = vadd.f32 %v130, %v204
    %v206 = vpop.f32.mrb[0].mxu0
    %207 = vmatprep.mubr.f32.mxu0 %v47
    %208 = vmatmul.mubr.f32.gmra.mrb[0].mxu0 %v46
    %v209 = vpop.f32.mrb[0].mxu0
    %v210 = vadd.f32 %v135, %v209
    %v211 = vpop.f32.mrb[0].mxu0
    %212 = vdwg.mxu0
    %vm213 = vcmask 31744
    %214 = vst.msk [vmem:[%s3] sm:$0xff] %vm213, %v205
    %215 = vst.msk [vmem:[%s3 + $0x8] sm:$0xff] %vm213, %v210
    // Predicated region
    $region22: #{tpu_custom_call.1} parent=1 // pred_check
      _
    $region23: #{tpu_custom_call.1} parent=1 // pred_check_branch
      %217 = sbr.rel (0) target = $region25
    $region24: #{tpu_custom_call.1} parent=1 // pred_region
      _
    $region25: #{tpu_custom_call.1} parent=1 // pred_fallthru
      _
    // Predicated region
    $region26: #{tpu_custom_call.1} parent=1 // pred_check
      _
    $region27: #{tpu_custom_call.1} parent=1 // pred_check_branch
      %219 = sbr.rel (0) target = $region29
    $region28: #{tpu_custom_call.1} parent=1 // pred_region
      _
    $region29: #{tpu_custom_call.1} parent=1 // pred_fallthru
      _
    %220 = vsyncpa [#allocation3], 1
    %221 = vsyncpa [#allocation5], 1

</llo_original>
